<compile_context>
chip_gen: v5e
topology: v5e:2x2
jax: 0.10.0
libtpu: 0.0.40
codegen_flags: <defaults>
</compile_context>

<pallas_src>
import jax
import jax.numpy as jnp
from jax.experimental import pallas as pl
from jax.experimental.pallas import tpu as pltpu

NETWORK_SIZE = [16, 32, 64]          # as passed to EmbeddingNet(network_size=...)
FULL_SIZES = [1] + NETWORK_SIZE      # self.network_size inside the module


def embedding_net_kernel(x_ref,
                         w0_ref, b0_ref,
                         w1_ref, b1_ref,
                         w2_ref, b2_ref,
                         o_ref):
    """Whole embedding MLP for one tile of rows.

    Compute layout is (features, rows): rows sit on the 128-wide lane axis so
    every tanh / residual add runs on fully-populated vregs.  The final block
    is transposed in-kernel so the HBM output is already row-major (N, 64).
    """
    x = x_ref[...]                                            # (1, TN) f32
    tn = x.shape[-1]

    # layer 0: 1 -> 16.  A K=1 matmul would be >99% MXU padding; use a VPU
    # broadcast multiply-add instead: (16,1) * (1,TN) + (16,1) -> (16,TN).
    h0 = jnp.tanh(w0_ref[...] * x + b0_ref[...])              # (16, TN)
    # 1 != 16 and 1*2 != 16 -> no residual on layer 0.

    # layer 1: 16 -> 32 (doubled, resnet_dt=False: x = h + cat(x, x)).
    h1 = jnp.tanh(
        jnp.dot(w1_ref[...], h0, preferred_element_type=jnp.float32)
        + b1_ref[...])                                        # (32, TN)
    # Residual without materializing cat(h0, h0): broadcast-add h0 onto the two
    # 16-row (8-sublane-aligned) halves of h1.
    x1 = (h1.reshape(2, 16, tn) + h0[None, :, :]).reshape(32, tn)

    # layer 2: 32 -> 64 (doubled, resnet_dt=False: x = h + cat(x, x)).
    h2 = jnp.tanh(
        jnp.dot(w2_ref[...], x1, preferred_element_type=jnp.float32)
        + b2_ref[...])                                        # (64, TN)
    x2 = (h2.reshape(2, 32, tn) + x1[None, :, :]).reshape(64, tn)

    # Fold the feature-major -> row-major transpose into the kernel (XLU work,
    # hidden under the output DMA / EUP) instead of a wrapper-side XLA
    # transpose that would re-read and re-write the whole output in HBM.
    o_ref[...] = x2.T.astype(o_ref.dtype)


def embedding_net_forward(x, params, *, tile_rows=8192, out_dtype=jnp.float32):
    """x: (N, 1) float32.  params: list of (W (out, in), b (out, 1)).

    Returns (N, network_size[-1]) in `out_dtype` (float32 by default to match
    the PyTorch module; pass jnp.bfloat16 to halve the output HBM writeback).
    """
    n = x.shape[0]
    d_out = params[-1][0].shape[0]

    # ---- tile sizing ----
    # One grid step for small / mid-size N (the grid is a serial loop on a
    # TensorCore, so splitting only pays when each step still carries several
    # thousand lanes); 8192-row steps for large N so multi-TC chips (v7x) can
    # shard the "parallel" grid axis and DMA pipelines behind compute.
    lanes = 128
    n_lane = pl.cdiv(max(n, 1), lanes) * lanes
    tile_rows = pl.cdiv(tile_rows, lanes) * lanes
    if n_lane <= tile_rows:
        tile_rows = n_lane
    n_pad = pl.cdiv(n, tile_rows) * tile_rows

    # ---- transpose input to (1, N) and zero-pad the row (lane) axis ----
    xt = jnp.pad(x.reshape(1, n).astype(jnp.float32), ((0, 0), (0, n_pad - n)))

    # Weights/biases are tiny (<10 KiB total): each is one full block with a
    # constant index_map, so it stays resident in VMEM across all grid steps.
    weight_specs = []
    flat_params = []
    for w, b in params:
        weight_specs.append(pl.BlockSpec(w.shape, lambda i: (0, 0)))
        weight_specs.append(pl.BlockSpec(b.shape, lambda i: (0, 0)))
        flat_params.extend([w.astype(jnp.float32), b.astype(jnp.float32)])

    grid = (n_pad // tile_rows,)
    out = pl.pallas_call(
        embedding_net_kernel,
        out_shape=jax.ShapeDtypeStruct((n_pad, d_out), out_dtype),
        grid_spec=pltpu.PrefetchScalarGridSpec(
            num_scalar_prefetch=0,
            grid=grid,
            in_specs=[pl.BlockSpec((1, tile_rows), lambda i: (0, i))]
                     + weight_specs,
            out_specs=pl.BlockSpec((tile_rows, d_out), lambda i: (i, 0)),
        ),
        compiler_params=pltpu.CompilerParams(
            dimension_semantics=("parallel",),
            # Double-buffered blocks + materialized (16/32/64, tile) f32
            # intermediates are ~12-14 MiB at tile 8192; raise v5e's 16 MiB
            # scoped default so nothing spills (matches v6e/v7x defaults).
            vmem_limit_bytes=32 * 1024 * 1024),
    )(xt, *flat_params)

    # Drop row padding (a no-op when n is already a multiple of tile_rows).
    return out[:n]


def init_params(key):
    """Deterministic init matching the PyTorch __init__ statistics:
       weight ~ N(0, 1/sqrt(in+out)), bias ~ N(0, 1).
       Stored transposed: W is (out, in), b is (out, 1)."""
    params = []
    for i in range(len(FULL_SIZES) - 1):
        d_in, d_out = FULL_SIZES[i], FULL_SIZES[i + 1]
        key, kw, kb = jax.random.split(key, 3)
        std = 1.0 / (d_in + d_out) ** 0.5
        w = jax.random.normal(kw, (d_out, d_in), jnp.float32) * std
        b = jax.random.normal(kb, (d_out, 1), jnp.float32)
        params.append((w, b))
    return params


def reference_forward(x, params):
    """Pure-JAX reference mirroring the PyTorch forward (row-major x)."""
    for i, (w, b) in enumerate(params):
        d_in, d_out = FULL_SIZES[i], FULL_SIZES[i + 1]
        h = jnp.tanh(x @ w.T + b.T)
        if d_in == d_out:
            x = h + x
        elif d_in * 2 == d_out:
            x = h + jnp.concatenate([x, x], axis=-1)
        else:
            x = h
    return x


if __name__ == "__main__":
    key = jax.random.PRNGKey(0)
    key, kx = jax.random.split(key)

    # Deliberately not a multiple of 128 to exercise the pad / slice path.
    n_rows = 1000                                # e.g. batch * neighbors
    x = jax.random.normal(kx, (n_rows, 1), jnp.float32)

    params = init_params(key)

    out = embedding_net_forward(x, params)
    out = jax.block_until_ready(out)

    ref = reference_forward(x, params)
    assert out.shape == (n_rows, NETWORK_SIZE[-1])
    assert jnp.allclose(out, ref, atol=1e-4, rtol=1e-4), "mismatch vs reference"

    print("KERNEL_OK")
</pallas_src>

<mosaic_0001>
module attributes {stable_mosaic.version = 11 : i64} {
  func.func @embedding_net_kernel(%arg0: i32, %arg1: memref<1x1024xf32, #tpu.memory_space<vmem>>, %arg2: memref<16x1xf32, #tpu.memory_space<vmem>>, %arg3: memref<16x1xf32, #tpu.memory_space<vmem>>, %arg4: memref<32x16xf32, #tpu.memory_space<vmem>>, %arg5: memref<32x1xf32, #tpu.memory_space<vmem>>, %arg6: memref<64x32xf32, #tpu.memory_space<vmem>>, %arg7: memref<64x1xf32, #tpu.memory_space<vmem>>, %arg8: memref<1024x64xf32, #tpu.memory_space<vmem>>) attributes {dimension_semantics = [#tpu.dimension_semantics<parallel>], iteration_bounds = array<i64: 1>, scalar_prefetch = 0 : i64, scratch_operands = 0 : i64, tpu.core_type = #tpu.core_type<tc>, window_params = [{transform_indices = @transform_0, window_bounds = array<i64: 1, 1024>}, {pipeline_mode = #tpu.pipeline_mode<synchronous>, transform_indices = @transform_1, window_bounds = array<i64: 16, 1>}, {pipeline_mode = #tpu.pipeline_mode<synchronous>, transform_indices = @transform_2, window_bounds = array<i64: 16, 1>}, {pipeline_mode = #tpu.pipeline_mode<synchronous>, transform_indices = @transform_3, window_bounds = array<i64: 32, 16>}, {pipeline_mode = #tpu.pipeline_mode<synchronous>, transform_indices = @transform_4, window_bounds = array<i64: 32, 1>}, {pipeline_mode = #tpu.pipeline_mode<synchronous>, transform_indices = @transform_5, window_bounds = array<i64: 64, 32>}, {pipeline_mode = #tpu.pipeline_mode<synchronous>, transform_indices = @transform_6, window_bounds = array<i64: 64, 1>}, {transform_indices = @transform_7, window_bounds = array<i64: 1024, 64>}]} {
    %c0 = arith.constant 0 : index
    %c0_0 = arith.constant 0 : index
    %0 = vector.load %arg1[%c0, %c0_0] : memref<1x1024xf32, #tpu.memory_space<vmem>>, vector<1x1024xf32>
    %c0_1 = arith.constant 0 : index
    %c0_2 = arith.constant 0 : index
    %1 = vector.load %arg2[%c0_1, %c0_2] : memref<16x1xf32, #tpu.memory_space<vmem>>, vector<16x1xf32>
    %2 = vector.broadcast %1 : vector<16x1xf32> to vector<16x1024xf32>
    %3 = vector.broadcast %0 : vector<1x1024xf32> to vector<16x1024xf32>
    %4 = arith.mulf %2, %3 : vector<16x1024xf32>
    %c0_3 = arith.constant 0 : index
    %c0_4 = arith.constant 0 : index
    %5 = vector.load %arg3[%c0_3, %c0_4] : memref<16x1xf32, #tpu.memory_space<vmem>>, vector<16x1xf32>
    %6 = vector.broadcast %5 : vector<16x1xf32> to vector<16x1024xf32>
    %7 = arith.addf %4, %6 : vector<16x1024xf32>
    %8 = math.tanh %7 : vector<16x1024xf32>
    %c0_5 = arith.constant 0 : index
    %c0_6 = arith.constant 0 : index
    %9 = vector.load %arg4[%c0_5, %c0_6] : memref<32x16xf32, #tpu.memory_space<vmem>>, vector<32x16xf32>
    %cst = arith.constant dense<0.000000e+00> : vector<32x1024xf32>
    %10 = tpu.matmul %9, %8, %cst {dimension_numbers = #tpu.dot_dimension_numbers<[1], [0], [0], [1], [0, 0, 1, 1], [], []>} : vector<32x16xf32>, vector<16x1024xf32>, vector<32x1024xf32> -> vector<32x1024xf32>
    %c0_7 = arith.constant 0 : index
    %c0_8 = arith.constant 0 : index
    %11 = vector.load %arg5[%c0_7, %c0_8] : memref<32x1xf32, #tpu.memory_space<vmem>>, vector<32x1xf32>
    %12 = vector.broadcast %11 : vector<32x1xf32> to vector<32x1024xf32>
    %13 = arith.addf %10, %12 : vector<32x1024xf32>
    %14 = math.tanh %13 : vector<32x1024xf32>
    %15 = vector.shape_cast %14 : vector<32x1024xf32> to vector<2x16x1024xf32>
    %16 = vector.shape_cast %8 : vector<16x1024xf32> to vector<1x16x1024xf32>
    %17 = vector.broadcast %16 : vector<1x16x1024xf32> to vector<2x16x1024xf32>
    %18 = arith.addf %15, %17 : vector<2x16x1024xf32>
    %19 = vector.shape_cast %18 : vector<2x16x1024xf32> to vector<32x1024xf32>
    %c0_9 = arith.constant 0 : index
    %c0_10 = arith.constant 0 : index
    %20 = vector.load %arg6[%c0_9, %c0_10] : memref<64x32xf32, #tpu.memory_space<vmem>>, vector<64x32xf32>
    %cst_11 = arith.constant dense<0.000000e+00> : vector<64x1024xf32>
    %21 = tpu.matmul %20, %19, %cst_11 {dimension_numbers = #tpu.dot_dimension_numbers<[1], [0], [0], [1], [0, 0, 1, 1], [], []>} : vector<64x32xf32>, vector<32x1024xf32>, vector<64x1024xf32> -> vector<64x1024xf32>
    %c0_12 = arith.constant 0 : index
    %c0_13 = arith.constant 0 : index
    %22 = vector.load %arg7[%c0_12, %c0_13] : memref<64x1xf32, #tpu.memory_space<vmem>>, vector<64x1xf32>
    %23 = vector.broadcast %22 : vector<64x1xf32> to vector<64x1024xf32>
    %24 = arith.addf %21, %23 : vector<64x1024xf32>
    %25 = math.tanh %24 : vector<64x1024xf32>
    %26 = vector.shape_cast %25 : vector<64x1024xf32> to vector<2x32x1024xf32>
    %27 = vector.shape_cast %19 : vector<32x1024xf32> to vector<1x32x1024xf32>
    %28 = vector.broadcast %27 : vector<1x32x1024xf32> to vector<2x32x1024xf32>
    %29 = arith.addf %26, %28 : vector<2x32x1024xf32>
    %30 = vector.shape_cast %29 : vector<2x32x1024xf32> to vector<64x1024xf32>
    %31 = tpu.transpose %30, [1, 0] : vector<64x1024xf32> -> vector<1024x64xf32>
    %c0_14 = arith.constant 0 : index
    %c0_15 = arith.constant 0 : index
    %32 = vector.load %arg8[%c0_14, %c0_15] : memref<1024x64xf32, #tpu.memory_space<vmem>>, vector<1024x64xf32>
    tpu.vector_store %arg8[%c0_14, %c0_15], %31 {strides = array<i32>} : memref<1024x64xf32, #tpu.memory_space<vmem>>, vector<1024x64xf32>,
    return
  }
  func.func @transform_0(%arg0: i32) -> (i32, i32) {
    %c0_i32 = arith.constant 0 : i32
    %c0_i32_0 = arith.constant 0 : i32
    return %c0_i32, %arg0 : i32, i32
  }
  func.func @transform_1(%arg0: i32) -> (i32, i32) {
    %c0_i32 = arith.constant 0 : i32
    %c0_i32_0 = arith.constant 0 : i32
    %c0_i32_1 = arith.constant 0 : i32
    return %c0_i32, %c0_i32_0 : i32, i32
  }
  func.func @transform_2(%arg0: i32) -> (i32, i32) {
    %c0_i32 = arith.constant 0 : i32
    %c0_i32_0 = arith.constant 0 : i32
    %c0_i32_1 = arith.constant 0 : i32
    return %c0_i32, %c0_i32_0 : i32, i32
  }
  func.func @transform_3(%arg0: i32) -> (i32, i32) {
    %c0_i32 = arith.constant 0 : i32
    %c0_i32_0 = arith.constant 0 : i32
    %c0_i32_1 = arith.constant 0 : i32
    return %c0_i32, %c0_i32_0 : i32, i32
  }
  func.func @transform_4(%arg0: i32) -> (i32, i32) {
    %c0_i32 = arith.constant 0 : i32
    %c0_i32_0 = arith.constant 0 : i32
    %c0_i32_1 = arith.constant 0 : i32
    return %c0_i32, %c0_i32_0 : i32, i32
  }
  func.func @transform_5(%arg0: i32) -> (i32, i32) {
    %c0_i32 = arith.constant 0 : i32
    %c0_i32_0 = arith.constant 0 : i32
    %c0_i32_1 = arith.constant 0 : i32
    return %c0_i32, %c0_i32_0 : i32, i32
  }
  func.func @transform_6(%arg0: i32) -> (i32, i32) {
    %c0_i32 = arith.constant 0 : i32
    %c0_i32_0 = arith.constant 0 : i32
    %c0_i32_1 = arith.constant 0 : i32
    return %c0_i32, %c0_i32_0 : i32, i32
  }
  func.func @transform_7(%arg0: i32) -> (i32, i32) {
    %c0_i32 = arith.constant 0 : i32
    %c0_i32_0 = arith.constant 0 : i32
    return %arg0, %c0_i32 : i32, i32
  }
}

</mosaic_0001>

<llo_original>
// kernel: tpu_custom_call.1
$region0: #{tpu_custom_call.1}
  #allocation0 [shape = 'u32[]', space=smem, size = 0x4, offset = 0x4, fixed_abs, tag = 'smem constant byte address 0x4 - core index']
  #allocation1 [shape = 'u32[72,128]{1,0:T(1,128)}', space=vmem, size = 0x9000, scoped, tag = 'internal scratch']
  %s0 = inlined_call_operand.vmem [shape: f32[1,1024], index: 0, kind: input, shape index: {}]
  %s1 = inlined_call_operand.vmem [shape: f32[16,1], index: 1, kind: input, shape index: {}]
  %s2 = inlined_call_operand.vmem [shape: f32[16,1], index: 2, kind: input, shape index: {}]
  %s3 = inlined_call_operand.vmem [shape: f32[32,16], index: 3, kind: input, shape index: {}]
  %s4 = inlined_call_operand.vmem [shape: f32[32,1], index: 4, kind: input, shape index: {}]
  %s5 = inlined_call_operand.vmem [shape: f32[64,32], index: 5, kind: input, shape index: {}]
  %s6 = inlined_call_operand.vmem [shape: f32[64,1], index: 6, kind: input, shape index: {}]
  %s7 = inlined_call_operand.vmem [shape: f32[1024,64], index: 7, kind: output, shape index: {}]
  %s8 = sld [smem:[#allocation0]]
  $region38: #{tpu_custom_call.1} parent=0
    _
  %s10 = ssub.s32 1, %s8
  %s11 = scalar_select 0, %s10, %s8
  // Predicated region
  $region2: #{tpu_custom_call.1} parent=0 // pred_check
    _
  $region3: #{tpu_custom_call.1} parent=0 // pred_check_branch
    %13 = sbr.rel (0) target = $region5
  $region4: #{tpu_custom_call.1} parent=0 // pred_region
    _
  $region5: #{tpu_custom_call.1} parent=0 // pred_fallthru
    _
  // Predicated region
  $region6: #{tpu_custom_call.1} parent=0 // pred_check
    _
  $region7: #{tpu_custom_call.1} parent=0 // pred_check_branch
    %15 = sbr.rel (0) target = $region9
  $region8: #{tpu_custom_call.1} parent=0 // pred_region
    _
  $region9: #{tpu_custom_call.1} parent=0 // pred_fallthru
    _
  // Predicated region
  $region10: #{tpu_custom_call.1} parent=0 // pred_check
    _
  $region11: #{tpu_custom_call.1} parent=0 // pred_check_branch
    %17 = sbr.rel (0) target = $region13
  $region12: #{tpu_custom_call.1} parent=0 // pred_region
    _
  $region13: #{tpu_custom_call.1} parent=0 // pred_fallthru
    _
  // Predicated region
  $region14: #{tpu_custom_call.1} parent=0 // pred_check
    _
  $region15: #{tpu_custom_call.1} parent=0 // pred_check_branch
    %19 = sbr.rel (0) target = $region17
  $region16: #{tpu_custom_call.1} parent=0 // pred_region
    _
  $region17: #{tpu_custom_call.1} parent=0 // pred_fallthru
    _
  // Predicated region
  $region18: #{tpu_custom_call.1} parent=0 // pred_check
    _
  $region19: #{tpu_custom_call.1} parent=0 // pred_check_branch
    %21 = sbr.rel (0) target = $region21
  $region20: #{tpu_custom_call.1} parent=0 // pred_region
    _
  $region21: #{tpu_custom_call.1} parent=0 // pred_fallthru
    _
  // Predicated region
  $region22: #{tpu_custom_call.1} parent=0 // pred_check
    _
  $region23: #{tpu_custom_call.1} parent=0 // pred_check_branch
    %23 = sbr.rel (0) target = $region25
  $region24: #{tpu_custom_call.1} parent=0 // pred_region
    _
  $region25: #{tpu_custom_call.1} parent=0 // pred_fallthru
    _
  // Predicated region
  $region26: #{tpu_custom_call.1} parent=0 // pred_check
    _
  $region27: #{tpu_custom_call.1} parent=0 // pred_check_branch
    %25 = sbr.rel (0) target = $region29
  $region28: #{tpu_custom_call.1} parent=0 // pred_region
    _
  $region29: #{tpu_custom_call.1} parent=0 // pred_fallthru
    _
  %v26 = vld [vmem:[%s0] sm:$0xff]
  %v27 = vld [vmem:[%s1] sm:$0xff]
  %v28 = vld [vmem:[%s1 + $0x8] sm:$0xff]
  %30 = vset.pattern.permute.xlu0 0
  %31 = vperm.xlu0 %30, %v27
  %v32 = vpop.permute.xlu0 %31
  %35 = vset.pattern.permute.xlu0 0
  %36 = vperm.xlu0 %35, %v28
  %v37 = vpop.permute.xlu0 %36
  %v40 = vperm.slane %v26, 0
  %v41 = vperm.slane %v26, 1
  %v42 = vperm.slane %v26, 2
  %v43 = vperm.slane %v26, 3
  %v44 = vperm.slane %v26, 4
  %v45 = vperm.slane %v26, 5
  %v46 = vperm.slane %v26, 6
  %v47 = vperm.slane %v26, 7
  %v56 = vmul.f32 %v32, %v40
  %v57 = vmul.f32 %v32, %v41
  %v58 = vmul.f32 %v32, %v42
  %v59 = vmul.f32 %v32, %v43
  %v60 = vmul.f32 %v32, %v44
  %v61 = vmul.f32 %v32, %v45
  %v62 = vmul.f32 %v32, %v46
  %v63 = vmul.f32 %v32, %v47
  %v64 = vmul.f32 %v37, %v40
  %v65 = vmul.f32 %v37, %v41
  %v66 = vmul.f32 %v37, %v42
  %v67 = vmul.f32 %v37, %v43
  %v68 = vmul.f32 %v37, %v44
  %v69 = vmul.f32 %v37, %v45
  %v70 = vmul.f32 %v37, %v46
  %v71 = vmul.f32 %v37, %v47
  %v72 = vld [vmem:[%s2] sm:$0xff]
  %v73 = vld [vmem:[%s2 + $0x8] sm:$0xff]
  %75 = vset.pattern.permute.xlu0 0
  %76 = vperm.xlu0 %75, %v72
  %v77 = vpop.permute.xlu0 %76
  %80 = vset.pattern.permute.xlu0 0
  %81 = vperm.xlu0 %80, %v73
  %v82 = vpop.permute.xlu0 %81
  %v84 = vadd.f32 %v56, %v77
  %v85 = vadd.f32 %v57, %v77
  %v86 = vadd.f32 %v58, %v77
  %v87 = vadd.f32 %v59, %v77
  %v88 = vadd.f32 %v60, %v77
  %v89 = vadd.f32 %v61, %v77
  %v90 = vadd.f32 %v62, %v77
  %v91 = vadd.f32 %v63, %v77
  %v92 = vadd.f32 %v64, %v82
  %v93 = vadd.f32 %v65, %v82
  %v94 = vadd.f32 %v66, %v82
  %v95 = vadd.f32 %v67, %v82
  %v96 = vadd.f32 %v68, %v82
  %v97 = vadd.f32 %v69, %v82
  %v98 = vadd.f32 %v70, %v82
  %v99 = vadd.f32 %v71, %v82
  %v100 = vtanh.pop %v84
  %v101 = vtanh.pop %v85
  %v102 = vtanh.pop %v86
  %v103 = vtanh.pop %v87
  %v104 = vtanh.pop %v88
  %v105 = vtanh.pop %v89
  %v106 = vtanh.pop %v90
  %v107 = vtanh.pop %v91
  %v108 = vtanh.pop %v92
  %v109 = vtanh.pop %v93
  %v110 = vtanh.pop %v94
  %v111 = vtanh.pop %v95
  %v112 = vtanh.pop %v96
  %v113 = vtanh.pop %v97
  %v114 = vtanh.pop %v98
  %v115 = vtanh.pop %v99
  %v116 = vld [vmem:[%s3] sm:$0xff]
  %v117 = vld [vmem:[%s3 + $0x8] sm:$0xff]
  %v118 = vld [vmem:[%s3 + $0x10] sm:$0xff]
  %v119 = vld [vmem:[%s3 + $0x18] sm:$0xff]
  %v120 = vld [vmem:[%s4] sm:$0xff]
  %v121 = vld [vmem:[%s4 + $0x8] sm:$0xff]
  %v122 = vld [vmem:[%s4 + $0x10] sm:$0xff]
  %v123 = vld [vmem:[%s4 + $0x18] sm:$0xff]
  %125 = vset.pattern.permute.xlu0 0
  %126 = vperm.xlu0 %125, %v120
  %v127 = vpop.permute.xlu0 %126
  %130 = vset.pattern.permute.xlu0 0
  %131 = vperm.xlu0 %130, %v121
  %v132 = vpop.permute.xlu0 %131
  %135 = vset.pattern.permute.xlu0 0
  %136 = vperm.xlu0 %135, %v122
  %v137 = vpop.permute.xlu0 %136
  %140 = vset.pattern.permute.xlu0 0
  %141 = vperm.xlu0 %140, %v123
  %v142 = vpop.permute.xlu0 %141
  %vm144 = vcmask 130048
  %v146 = vsel %vm144, %v116, 0
  %v149 = vsel %vm144, %v117, 0
  %v152 = vsel %vm144, %v118, 0
  %v155 = vsel %vm144, %v119, 0
  %157 = vmatpush.msra.mxu0 0.0
  %158 = vmatpush.msra.mxu0 0.0
  %159 = vmatpush.msra.mxu0 0.0
  %160 = vmatpush.msra.mxu0 0.0
  %161 = vmatpush.msra.mxu0 0.0
  %162 = vmatpush.msra.mxu0 0.0
  %163 = vmatpush.msra.mxu0 0.0
  %164 = vmatpush.msra.mxu0 0.0
  %165 = vmatpush.msra.mxu0 0.0
  %166 = vmatpush.msra.mxu0 0.0
  %167 = vmatpush.msra.mxu0 0.0
  %168 = vmatpush.msra.mxu0 0.0
  %169 = vmatpush.msra.mxu0 0.0
  %170 = vmatpush.msra.mxu0 0.0
  %171 = vmatpush.msra.mxu0 %v108
  %172 = vmatpush.msra.mxu0 %v100
  %173 = vmatmul.f32.gmra.mxu0 %v146
  %v174 = vpop.f32.mrf.mxu0
  %v175 = vadd.f32 %v127, %v174
  %176 = vmatmul.f32.gmra.mxu0 %v149
  %v177 = vpop.f32.mrf.mxu0
  %v178 = vadd.f32 %v132, %v177
  %179 = vmatmul.f32.gmra.mxu0 %v152
  %v180 = vpop.f32.mrf.mxu0
  %v181 = vadd.f32 %v137, %v180
  %182 = vmatmul.f32.gmra.mxu0 %v155
  %v183 = vpop.f32.mrf.mxu0
  %v184 = vadd.f32 %v142, %v183
  %185 = vdwg.mxu0
  %186 = vmatpush.msra.mxu0 0.0
  %187 = vmatpush.msra.mxu0 0.0
  %188 = vmatpush.msra.mxu0 0.0
  %189 = vmatpush.msra.mxu0 0.0
  %190 = vmatpush.msra.mxu0 0.0
  %191 = vmatpush.msra.mxu0 0.0
  %192 = vmatpush.msra.mxu0 0.0
  %193 = vmatpush.msra.mxu0 0.0
  %194 = vmatpush.msra.mxu0 0.0
  %195 = vmatpush.msra.mxu0 0.0
  %196 = vmatpush.msra.mxu0 0.0
  %197 = vmatpush.msra.mxu0 0.0
  %198 = vmatpush.msra.mxu0 0.0
  %199 = vmatpush.msra.mxu0 0.0
  %200 = vmatpush.msra.mxu0 %v109
  %201 = vmatpush.msra.mxu0 %v101
  %202 = vmatmul.f32.gmra.mxu0 %v146
  %v203 = vpop.f32.mrf.mxu0
  %v204 = vadd.f32 %v127, %v203
  %205 = vmatmul.f32.gmra.mxu0 %v149
  %v206 = vpop.f32.mrf.mxu0
  %v207 = vadd.f32 %v132, %v206
  %208 = vmatmul.f32.gmra.mxu0 %v152
  %v209 = vpop.f32.mrf.mxu0
  %v210 = vadd.f32 %v137, %v209
  %211 = vmatmul.f32.gmra.mxu0 %v155
  %v212 = vpop.f32.mrf.mxu0
  %v213 = vadd.f32 %v142, %v212
  %214 = vdwg.mxu0
  %215 = vmatpush.msra.mxu0 0.0
  %216 = vmatpush.msra.mxu0 0.0
  %217 = vmatpush.msra.mxu0 0.0
  %218 = vmatpush.msra.mxu0 0.0
  %219 = vmatpush.msra.mxu0 0.0
  %220 = vmatpush.msra.mxu0 0.0
  %221 = vmatpush.msra.mxu0 0.0
  %222 = vmatpush.msra.mxu0 0.0
  %223 = vmatpush.msra.mxu0 0.0
  %224 = vmatpush.msra.mxu0 0.0
  %225 = vmatpush.msra.mxu0 0.0
  %226 = vmatpush.msra.mxu0 0.0
  %227 = vmatpush.msra.mxu0 0.0
  %228 = vmatpush.msra.mxu0 0.0
  %229 = vmatpush.msra.mxu0 %v110
  %230 = vmatpush.msra.mxu0 %v102
  %231 = vmatmul.f32.gmra.mxu0 %v146
  %v232 = vpop.f32.mrf.mxu0
  %v233 = vadd.f32 %v127, %v232
  %234 = vmatmul.f32.gmra.mxu0 %v149
  %v235 = vpop.f32.mrf.mxu0
  %v236 = vadd.f32 %v132, %v235
  %237 = vmatmul.f32.gmra.mxu0 %v152
  %v238 = vpop.f32.mrf.mxu0
  %v239 = vadd.f32 %v137, %v238
  %240 = vmatmul.f32.gmra.mxu0 %v155
  %v241 = vpop.f32.mrf.mxu0
  %v242 = vadd.f32 %v142, %v241
  %243 = vdwg.mxu0
  %244 = vmatpush.msra.mxu0 0.0
  %245 = vmatpush.msra.mxu0 0.0
  %246 = vmatpush.msra.mxu0 0.0
  %247 = vmatpush.msra.mxu0 0.0
  %248 = vmatpush.msra.mxu0 0.0
  %249 = vmatpush.msra.mxu0 0.0
  %250 = vmatpush.msra.mxu0 0.0
  %251 = vmatpush.msra.mxu0 0.0
  %252 = vmatpush.msra.mxu0 0.0
  %253 = vmatpush.msra.mxu0 0.0
  %254 = vmatpush.msra.mxu0 0.0
  %255 = vmatpush.msra.mxu0 0.0
  %256 = vmatpush.msra.mxu0 0.0
  %257 = vmatpush.msra.mxu0 0.0
  %258 = vmatpush.msra.mxu0 %v111
  %259 = vmatpush.msra.mxu0 %v103
  %260 = vmatmul.f32.gmra.mxu0 %v146
  %v261 = vpop.f32.mrf.mxu0
  %v262 = vadd.f32 %v127, %v261
  %263 = vmatmul.f32.gmra.mxu0 %v149
  %v264 = vpop.f32.mrf.mxu0
  %v265 = vadd.f32 %v132, %v264
  %266 = vmatmul.f32.gmra.mxu0 %v152
  %v267 = vpop.f32.mrf.mxu0
  %v268 = vadd.f32 %v137, %v267
  %269 = vmatmul.f32.gmra.mxu0 %v155
  %v270 = vpop.f32.mrf.mxu0
  %v271 = vadd.f32 %v142, %v270
  %272 = vdwg.mxu0
  %273 = vmatpush.msra.mxu0 0.0
  %274 = vmatpush.msra.mxu0 0.0
  %275 = vmatpush.msra.mxu0 0.0
  %276 = vmatpush.msra.mxu0 0.0
  %277 = vmatpush.msra.mxu0 0.0
  %278 = vmatpush.msra.mxu0 0.0
  %279 = vmatpush.msra.mxu0 0.0
  %280 = vmatpush.msra.mxu0 0.0
  %281 = vmatpush.msra.mxu0 0.0
  %282 = vmatpush.msra.mxu0 0.0
  %283 = vmatpush.msra.mxu0 0.0
  %284 = vmatpush.msra.mxu0 0.0
  %285 = vmatpush.msra.mxu0 0.0
  %286 = vmatpush.msra.mxu0 0.0
  %287 = vmatpush.msra.mxu0 %v112
  %288 = vmatpush.msra.mxu0 %v104
  %289 = vmatmul.f32.gmra.mxu0 %v146
  %v290 = vpop.f32.mrf.mxu0
  %v291 = vadd.f32 %v127, %v290
  %292 = vmatmul.f32.gmra.mxu0 %v149
  %v293 = vpop.f32.mrf.mxu0
  %v294 = vadd.f32 %v132, %v293
  %295 = vmatmul.f32.gmra.mxu0 %v152
  %v296 = vpop.f32.mrf.mxu0
  %v297 = vadd.f32 %v137, %v296
  %298 = vmatmul.f32.gmra.mxu0 %v155
  %v299 = vpop.f32.mrf.mxu0
  %v300 = vadd.f32 %v142, %v299
  %301 = vdwg.mxu0
  %302 = vmatpush.msra.mxu0 0.0
  %303 = vmatpush.msra.mxu0 0.0
  %304 = vmatpush.msra.mxu0 0.0
  %305 = vmatpush.msra.mxu0 0.0
  %306 = vmatpush.msra.mxu0 0.0
  %307 = vmatpush.msra.mxu0 0.0
  %308 = vmatpush.msra.mxu0 0.0
  %309 = vmatpush.msra.mxu0 0.0
  %310 = vmatpush.msra.mxu0 0.0
  %311 = vmatpush.msra.mxu0 0.0
  %312 = vmatpush.msra.mxu0 0.0
  %313 = vmatpush.msra.mxu0 0.0
  %314 = vmatpush.msra.mxu0 0.0
  %315 = vmatpush.msra.mxu0 0.0
  %316 = vmatpush.msra.mxu0 %v113
  %317 = vmatpush.msra.mxu0 %v105
  %318 = vmatmul.f32.gmra.mxu0 %v146
  %v319 = vpop.f32.mrf.mxu0
  %v320 = vadd.f32 %v127, %v319
  %321 = vmatmul.f32.gmra.mxu0 %v149
  %v322 = vpop.f32.mrf.mxu0
  %v323 = vadd.f32 %v132, %v322
  %324 = vmatmul.f32.gmra.mxu0 %v152
  %v325 = vpop.f32.mrf.mxu0
  %v326 = vadd.f32 %v137, %v325
  %327 = vmatmul.f32.gmra.mxu0 %v155
  %v328 = vpop.f32.mrf.mxu0
  %v329 = vadd.f32 %v142, %v328
  %330 = vdwg.mxu0
  %331 = vmatpush.msra.mxu0 0.0
  %332 = vmatpush.msra.mxu0 0.0
  %333 = vmatpush.msra.mxu0 0.0
  %334 = vmatpush.msra.mxu0 0.0
  %335 = vmatpush.msra.mxu0 0.0
  %336 = vmatpush.msra.mxu0 0.0
  %337 = vmatpush.msra.mxu0 0.0
  %338 = vmatpush.msra.mxu0 0.0
  %339 = vmatpush.msra.mxu0 0.0
  %340 = vmatpush.msra.mxu0 0.0
  %341 = vmatpush.msra.mxu0 0.0
  %342 = vmatpush.msra.mxu0 0.0
  %343 = vmatpush.msra.mxu0 0.0
  %344 = vmatpush.msra.mxu0 0.0
  %345 = vmatpush.msra.mxu0 %v114
  %346 = vmatpush.msra.mxu0 %v106
  %347 = vmatmul.f32.gmra.mxu0 %v146
  %v348 = vpop.f32.mrf.mxu0
  %v349 = vadd.f32 %v127, %v348
  %350 = vmatmul.f32.gmra.mxu0 %v149
  %v351 = vpop.f32.mrf.mxu0
  %v352 = vadd.f32 %v132, %v351
  %353 = vmatmul.f32.gmra.mxu0 %v152
  %v354 = vpop.f32.mrf.mxu0
  %v355 = vadd.f32 %v137, %v354
  %356 = vmatmul.f32.gmra.mxu0 %v155
  %v357 = vpop.f32.mrf.mxu0
  %v358 = vadd.f32 %v142, %v357
  %359 = vdwg.mxu0
  %360 = vmatpush.msra.mxu0 0.0
  %361 = vmatpush.msra.mxu0 0.0
  %362 = vmatpush.msra.mxu0 0.0
  %363 = vmatpush.msra.mxu0 0.0
  %364 = vmatpush.msra.mxu0 0.0
  %365 = vmatpush.msra.mxu0 0.0
  %366 = vmatpush.msra.mxu0 0.0
  %367 = vmatpush.msra.mxu0 0.0
  %368 = vmatpush.msra.mxu0 0.0
  %369 = vmatpush.msra.mxu0 0.0
  %370 = vmatpush.msra.mxu0 0.0
  %371 = vmatpush.msra.mxu0 0.0
  %372 = vmatpush.msra.mxu0 0.0
  %373 = vmatpush.msra.mxu0 0.0
  %374 = vmatpush.msra.mxu0 %v115
  %375 = vmatpush.msra.mxu0 %v107
  %376 = vmatmul.f32.gmra.mxu0 %v146
  %v377 = vpop.f32.mrf.mxu0
  %v378 = vadd.f32 %v127, %v377
  %379 = vmatmul.f32.gmra.mxu0 %v149
  %v380 = vpop.f32.mrf.mxu0
  %v381 = vadd.f32 %v132, %v380
  %382 = vmatmul.f32.gmra.mxu0 %v152
  %v383 = vpop.f32.mrf.mxu0
  %v384 = vadd.f32 %v137, %v383
  %385 = vmatmul.f32.gmra.mxu0 %v155
  %v386 = vpop.f32.mrf.mxu0
  %v387 = vadd.f32 %v142, %v386
  %388 = vdwg.mxu0
  %v389 = vtanh.pop %v175
  %v390 = vtanh.pop %v204
  %v391 = vtanh.pop %v233
  %v392 = vtanh.pop %v262
  %v393 = vtanh.pop %v291
  %v394 = vtanh.pop %v320
  %v395 = vtanh.pop %v349
  %v396 = vtanh.pop %v378
  %v397 = vtanh.pop %v178
  %v398 = vtanh.pop %v207
  %v399 = vtanh.pop %v236
  %v400 = vtanh.pop %v265
  %v401 = vtanh.pop %v294
  %v402 = vtanh.pop %v323
  %v403 = vtanh.pop %v352
  %v404 = vtanh.pop %v381
  %v405 = vtanh.pop %v181
  %v406 = vtanh.pop %v210
  %v407 = vtanh.pop %v239
  %v408 = vtanh.pop %v268
  %v409 = vtanh.pop %v297
  %v410 = vtanh.pop %v326
  %v411 = vtanh.pop %v355
  %v412 = vtanh.pop %v384
  %v413 = vtanh.pop %v184
  %v414 = vtanh.pop %v213
  %v415 = vtanh.pop %v242
  %v416 = vtanh.pop %v271
  %v417 = vtanh.pop %v300
  %v418 = vtanh.pop %v329
  %v419 = vtanh.pop %v358
  %v420 = vtanh.pop %v387
  %v421 = vadd.f32 %v389, %v100
  %v422 = vadd.f32 %v390, %v101
  %v423 = vadd.f32 %v391, %v102
  %v424 = vadd.f32 %v392, %v103
  %v425 = vadd.f32 %v393, %v104
  %v426 = vadd.f32 %v394, %v105
  %v427 = vadd.f32 %v395, %v106
  %v428 = vadd.f32 %v396, %v107
  %v429 = vadd.f32 %v397, %v108
  %v430 = vadd.f32 %v398, %v109
  %v431 = vadd.f32 %v399, %v110
  %v432 = vadd.f32 %v400, %v111
  %v433 = vadd.f32 %v401, %v112
  %v434 = vadd.f32 %v402, %v113
  %v435 = vadd.f32 %v403, %v114
  %v436 = vadd.f32 %v404, %v115
  %v437 = vadd.f32 %v405, %v100
  %v438 = vadd.f32 %v406, %v101
  %v439 = vadd.f32 %v407, %v102
  %v440 = vadd.f32 %v408, %v103
  %v441 = vadd.f32 %v409, %v104
  %v442 = vadd.f32 %v410, %v105
  %v443 = vadd.f32 %v411, %v106
  %v444 = vadd.f32 %v412, %v107
  %v445 = vadd.f32 %v413, %v108
  %v446 = vadd.f32 %v414, %v109
  %v447 = vadd.f32 %v415, %v110
  %v448 = vadd.f32 %v416, %v111
  %v449 = vadd.f32 %v417, %v112
  %v450 = vadd.f32 %v418, %v113
  %v451 = vadd.f32 %v419, %v114
  %v452 = vadd.f32 %v420, %v115
  %v453 = vld [vmem:[%s5] sm:$0xff]
  %v454 = vld [vmem:[%s5 + $0x8] sm:$0xff]
  %v455 = vld [vmem:[%s5 + $0x10] sm:$0xff]
  %v456 = vld [vmem:[%s5 + $0x18] sm:$0xff]
  %v457 = vld [vmem:[%s5 + $0x20] sm:$0xff]
  %v458 = vld [vmem:[%s5 + $0x28] sm:$0xff]
  %v459 = vld [vmem:[%s5 + $0x30] sm:$0xff]
  %v460 = vld [vmem:[%s5 + $0x38] sm:$0xff]
  %v461 = vld [vmem:[%s6] sm:$0xff]
  %v462 = vld [vmem:[%s6 + $0x8] sm:$0xff]
  %v463 = vld [vmem:[%s6 + $0x10] sm:$0xff]
  %v464 = vld [vmem:[%s6 + $0x18] sm:$0xff]
  %v465 = vld [vmem:[%s6 + $0x20] sm:$0xff]
  %v466 = vld [vmem:[%s6 + $0x28] sm:$0xff]
  %v467 = vld [vmem:[%s6 + $0x30] sm:$0xff]
  %v468 = vld [vmem:[%s6 + $0x38] sm:$0xff]
  %470 = vset.pattern.permute.xlu0 0
  %471 = vperm.xlu0 %470, %v461
  %v472 = vpop.permute.xlu0 %471
  %475 = vset.pattern.permute.xlu0 0
  %476 = vperm.xlu0 %475, %v462
  %v477 = vpop.permute.xlu0 %476
  %480 = vset.pattern.permute.xlu0 0
  %481 = vperm.xlu0 %480, %v463
  %v482 = vpop.permute.xlu0 %481
  %485 = vset.pattern.permute.xlu0 0
  %486 = vperm.xlu0 %485, %v464
  %v487 = vpop.permute.xlu0 %486
  %490 = vset.pattern.permute.xlu0 0
  %491 = vperm.xlu0 %490, %v465
  %v492 = vpop.permute.xlu0 %491
  %495 = vset.pattern.permute.xlu0 0
  %496 = vperm.xlu0 %495, %v466
  %v497 = vpop.permute.xlu0 %496
  %500 = vset.pattern.permute.xlu0 0
  %501 = vperm.xlu0 %500, %v467
  %v502 = vpop.permute.xlu0 %501
  %505 = vset.pattern.permute.xlu0 0
  %506 = vperm.xlu0 %505, %v468
  %v507 = vpop.permute.xlu0 %506
  %vm509 = vcmask 261120
  %v511 = vsel %vm509, %v453, 0
  %v514 = vsel %vm509, %v454, 0
  %v517 = vsel %vm509, %v455, 0
  %v520 = vsel %vm509, %v456, 0
  %v523 = vsel %vm509, %v457, 0
  %v526 = vsel %vm509, %v458, 0
  %v529 = vsel %vm509, %v459, 0
  %v532 = vsel %vm509, %v460, 0
  %534 = vmatpush.msra.mxu0 0.0
  %535 = vmatpush.msra.mxu0 0.0
  %536 = vmatpush.msra.mxu0 0.0
  %537 = vmatpush.msra.mxu0 0.0
  %538 = vmatpush.msra.mxu0 0.0
  %539 = vmatpush.msra.mxu0 0.0
  %540 = vmatpush.msra.mxu0 0.0
  %541 = vmatpush.msra.mxu0 0.0
  %542 = vmatpush.msra.mxu0 0.0
  %543 = vmatpush.msra.mxu0 0.0
  %544 = vmatpush.msra.mxu0 0.0
  %545 = vmatpush.msra.mxu0 0.0
  %546 = vmatpush.msra.mxu0 %v445
  %547 = vmatpush.msra.mxu0 %v437
  %548 = vmatpush.msra.mxu0 %v429
  %549 = vmatpush.msra.mxu0 %v421
  %550 = vmatmul.f32.gmra.mxu0 %v511
  %v551 = vpop.f32.mrf.mxu0
  %v552 = vadd.f32 %v472, %v551
  %553 = vmatmul.f32.gmra.mxu0 %v514
  %v554 = vpop.f32.mrf.mxu0
  %v555 = vadd.f32 %v477, %v554
  %556 = vmatmul.f32.gmra.mxu0 %v517
  %v557 = vpop.f32.mrf.mxu0
  %v558 = vadd.f32 %v482, %v557
  %559 = vmatmul.f32.gmra.mxu0 %v520
  %v560 = vpop.f32.mrf.mxu0
  %v561 = vadd.f32 %v487, %v560
  %562 = vmatmul.f32.gmra.mxu0 %v523
  %v563 = vpop.f32.mrf.mxu0
  %v564 = vadd.f32 %v492, %v563
  %565 = vmatmul.f32.gmra.mxu0 %v526
  %v566 = vpop.f32.mrf.mxu0
  %v567 = vadd.f32 %v497, %v566
  %568 = vmatmul.f32.gmra.mxu0 %v529
  %v569 = vpop.f32.mrf.mxu0
  %v570 = vadd.f32 %v502, %v569
  %571 = vmatmul.f32.gmra.mxu0 %v532
  %v572 = vpop.f32.mrf.mxu0
  %v573 = vadd.f32 %v507, %v572
  %574 = vdwg.mxu0
  %575 = vmatpush.msra.mxu0 0.0
  %576 = vmatpush.msra.mxu0 0.0
  %577 = vmatpush.msra.mxu0 0.0
  %578 = vmatpush.msra.mxu0 0.0
  %579 = vmatpush.msra.mxu0 0.0
  %580 = vmatpush.msra.mxu0 0.0
  %581 = vmatpush.msra.mxu0 0.0
  %582 = vmatpush.msra.mxu0 0.0
  %583 = vmatpush.msra.mxu0 0.0
  %584 = vmatpush.msra.mxu0 0.0
  %585 = vmatpush.msra.mxu0 0.0
  %586 = vmatpush.msra.mxu0 0.0
  %587 = vmatpush.msra.mxu0 %v446
  %588 = vmatpush.msra.mxu0 %v438
  %589 = vmatpush.msra.mxu0 %v430
  %590 = vmatpush.msra.mxu0 %v422
  %591 = vmatmul.f32.gmra.mxu0 %v511
  %v592 = vpop.f32.mrf.mxu0
  %v593 = vadd.f32 %v472, %v592
  %594 = vmatmul.f32.gmra.mxu0 %v514
  %v595 = vpop.f32.mrf.mxu0
  %v596 = vadd.f32 %v477, %v595
  %597 = vmatmul.f32.gmra.mxu0 %v517
  %v598 = vpop.f32.mrf.mxu0
  %v599 = vadd.f32 %v482, %v598
  %600 = vmatmul.f32.gmra.mxu0 %v520
  %v601 = vpop.f32.mrf.mxu0
  %v602 = vadd.f32 %v487, %v601
  %603 = vmatmul.f32.gmra.mxu0 %v523
  %v604 = vpop.f32.mrf.mxu0
  %v605 = vadd.f32 %v492, %v604
  %606 = vmatmul.f32.gmra.mxu0 %v526
  %v607 = vpop.f32.mrf.mxu0
  %v608 = vadd.f32 %v497, %v607
  %609 = vmatmul.f32.gmra.mxu0 %v529
  %v610 = vpop.f32.mrf.mxu0
  %v611 = vadd.f32 %v502, %v610
  %612 = vmatmul.f32.gmra.mxu0 %v532
  %v613 = vpop.f32.mrf.mxu0
  %v614 = vadd.f32 %v507, %v613
  %615 = vdwg.mxu0
  %616 = vmatpush.msra.mxu0 0.0
  %617 = vmatpush.msra.mxu0 0.0
  %618 = vmatpush.msra.mxu0 0.0
  %619 = vmatpush.msra.mxu0 0.0
  %620 = vmatpush.msra.mxu0 0.0
  %621 = vmatpush.msra.mxu0 0.0
  %622 = vmatpush.msra.mxu0 0.0
  %623 = vmatpush.msra.mxu0 0.0
  %624 = vmatpush.msra.mxu0 0.0
  %625 = vmatpush.msra.mxu0 0.0
  %626 = vmatpush.msra.mxu0 0.0
  %627 = vmatpush.msra.mxu0 0.0
  %628 = vmatpush.msra.mxu0 %v447
  %629 = vmatpush.msra.mxu0 %v439
  %630 = vmatpush.msra.mxu0 %v431
  %631 = vmatpush.msra.mxu0 %v423
  %632 = vmatmul.f32.gmra.mxu0 %v511
  %v633 = vpop.f32.mrf.mxu0
  %v634 = vadd.f32 %v472, %v633
  %635 = vmatmul.f32.gmra.mxu0 %v514
  %v636 = vpop.f32.mrf.mxu0
  %v637 = vadd.f32 %v477, %v636
  %638 = vmatmul.f32.gmra.mxu0 %v517
  %v639 = vpop.f32.mrf.mxu0
  %v640 = vadd.f32 %v482, %v639
  %641 = vmatmul.f32.gmra.mxu0 %v520
  %v642 = vpop.f32.mrf.mxu0
  %v643 = vadd.f32 %v487, %v642
  %644 = vmatmul.f32.gmra.mxu0 %v523
  %v645 = vpop.f32.mrf.mxu0
  %v646 = vadd.f32 %v492, %v645
  %647 = vmatmul.f32.gmra.mxu0 %v526
  %v648 = vpop.f32.mrf.mxu0
  %v649 = vadd.f32 %v497, %v648
  %650 = vmatmul.f32.gmra.mxu0 %v529
  %v651 = vpop.f32.mrf.mxu0
  %v652 = vadd.f32 %v502, %v651
  %653 = vmatmul.f32.gmra.mxu0 %v532
  %v654 = vpop.f32.mrf.mxu0
  %v655 = vadd.f32 %v507, %v654
  %656 = vdwg.mxu0
  %657 = vmatpush.msra.mxu0 0.0
  %658 = vmatpush.msra.mxu0 0.0
  %659 = vmatpush.msra.mxu0 0.0
  %660 = vmatpush.msra.mxu0 0.0
  %661 = vmatpush.msra.mxu0 0.0
  %662 = vmatpush.msra.mxu0 0.0
  %663 = vmatpush.msra.mxu0 0.0
  %664 = vmatpush.msra.mxu0 0.0
  %665 = vmatpush.msra.mxu0 0.0
  %666 = vmatpush.msra.mxu0 0.0
  %667 = vmatpush.msra.mxu0 0.0
  %668 = vmatpush.msra.mxu0 0.0
  %669 = vmatpush.msra.mxu0 %v448
  %670 = vmatpush.msra.mxu0 %v440
  %671 = vmatpush.msra.mxu0 %v432
  %672 = vmatpush.msra.mxu0 %v424
  %673 = vmatmul.f32.gmra.mxu0 %v511
  %v674 = vpop.f32.mrf.mxu0
  %v675 = vadd.f32 %v472, %v674
  %676 = vmatmul.f32.gmra.mxu0 %v514
  %v677 = vpop.f32.mrf.mxu0
  %v678 = vadd.f32 %v477, %v677
  %679 = vmatmul.f32.gmra.mxu0 %v517
  %v680 = vpop.f32.mrf.mxu0
  %v681 = vadd.f32 %v482, %v680
  %682 = vmatmul.f32.gmra.mxu0 %v520
  %v683 = vpop.f32.mrf.mxu0
  %v684 = vadd.f32 %v487, %v683
  %685 = vmatmul.f32.gmra.mxu0 %v523
  %v686 = vpop.f32.mrf.mxu0
  %v687 = vadd.f32 %v492, %v686
  %688 = vmatmul.f32.gmra.mxu0 %v526
  %v689 = vpop.f32.mrf.mxu0
  %v690 = vadd.f32 %v497, %v689
  %691 = vmatmul.f32.gmra.mxu0 %v529
  %v692 = vpop.f32.mrf.mxu0
  %v693 = vadd.f32 %v502, %v692
  %694 = vmatmul.f32.gmra.mxu0 %v532
  %v695 = vpop.f32.mrf.mxu0
  %v696 = vadd.f32 %v507, %v695
  %697 = vdwg.mxu0
  %698 = vmatpush.msra.mxu0 0.0
  %699 = vmatpush.msra.mxu0 0.0
  %700 = vmatpush.msra.mxu0 0.0
  %701 = vmatpush.msra.mxu0 0.0
  %702 = vmatpush.msra.mxu0 0.0
  %703 = vmatpush.msra.mxu0 0.0
  %704 = vmatpush.msra.mxu0 0.0
  %705 = vmatpush.msra.mxu0 0.0
  %706 = vmatpush.msra.mxu0 0.0
  %707 = vmatpush.msra.mxu0 0.0
  %708 = vmatpush.msra.mxu0 0.0
  %709 = vmatpush.msra.mxu0 0.0
  %710 = vmatpush.msra.mxu0 %v449
  %711 = vmatpush.msra.mxu0 %v441
  %712 = vmatpush.msra.mxu0 %v433
  %713 = vmatpush.msra.mxu0 %v425
  %714 = vmatmul.f32.gmra.mxu0 %v511
  %v715 = vpop.f32.mrf.mxu0
  %v716 = vadd.f32 %v472, %v715
  %717 = vmatmul.f32.gmra.mxu0 %v514
  %v718 = vpop.f32.mrf.mxu0
  %v719 = vadd.f32 %v477, %v718
  %720 = vmatmul.f32.gmra.mxu0 %v517
  %v721 = vpop.f32.mrf.mxu0
  %v722 = vadd.f32 %v482, %v721
  %723 = vmatmul.f32.gmra.mxu0 %v520
  %v724 = vpop.f32.mrf.mxu0
  %v725 = vadd.f32 %v487, %v724
  %726 = vmatmul.f32.gmra.mxu0 %v523
  %v727 = vpop.f32.mrf.mxu0
  %v728 = vadd.f32 %v492, %v727
  %729 = vmatmul.f32.gmra.mxu0 %v526
  %v730 = vpop.f32.mrf.mxu0
  %v731 = vadd.f32 %v497, %v730
  %732 = vmatmul.f32.gmra.mxu0 %v529
  %v733 = vpop.f32.mrf.mxu0
  %v734 = vadd.f32 %v502, %v733
  %735 = vmatmul.f32.gmra.mxu0 %v532
  %v736 = vpop.f32.mrf.mxu0
  %v737 = vadd.f32 %v507, %v736
  %738 = vdwg.mxu0
  %739 = vmatpush.msra.mxu0 0.0
  %740 = vmatpush.msra.mxu0 0.0
  %741 = vmatpush.msra.mxu0 0.0
  %742 = vmatpush.msra.mxu0 0.0
  %743 = vmatpush.msra.mxu0 0.0
  %744 = vmatpush.msra.mxu0 0.0
  %745 = vmatpush.msra.mxu0 0.0
  %746 = vmatpush.msra.mxu0 0.0
  %747 = vmatpush.msra.mxu0 0.0
  %748 = vmatpush.msra.mxu0 0.0
  %749 = vmatpush.msra.mxu0 0.0
  %750 = vmatpush.msra.mxu0 0.0
  %751 = vmatpush.msra.mxu0 %v450
  %752 = vmatpush.msra.mxu0 %v442
  %753 = vmatpush.msra.mxu0 %v434
  %754 = vmatpush.msra.mxu0 %v426
  %755 = vmatmul.f32.gmra.mxu0 %v511
  %v756 = vpop.f32.mrf.mxu0
  %v757 = vadd.f32 %v472, %v756
  %758 = vmatmul.f32.gmra.mxu0 %v514
  %v759 = vpop.f32.mrf.mxu0
  %v760 = vadd.f32 %v477, %v759
  %761 = vmatmul.f32.gmra.mxu0 %v517
  %v762 = vpop.f32.mrf.mxu0
  %v763 = vadd.f32 %v482, %v762
  %764 = vmatmul.f32.gmra.mxu0 %v520
  %v765 = vpop.f32.mrf.mxu0
  %v766 = vadd.f32 %v487, %v765
  %767 = vmatmul.f32.gmra.mxu0 %v523
  %v768 = vpop.f32.mrf.mxu0
  %v769 = vadd.f32 %v492, %v768
  %770 = vmatmul.f32.gmra.mxu0 %v526
  %v771 = vpop.f32.mrf.mxu0
  %v772 = vadd.f32 %v497, %v771
  %773 = vmatmul.f32.gmra.mxu0 %v529
  %v774 = vpop.f32.mrf.mxu0
  %v775 = vadd.f32 %v502, %v774
  %776 = vmatmul.f32.gmra.mxu0 %v532
  %v777 = vpop.f32.mrf.mxu0
  %v778 = vadd.f32 %v507, %v777
  %779 = vdwg.mxu0
  %780 = vmatpush.msra.mxu0 0.0
  %781 = vmatpush.msra.mxu0 0.0
  %782 = vmatpush.msra.mxu0 0.0
  %783 = vmatpush.msra.mxu0 0.0
  %784 = vmatpush.msra.mxu0 0.0
  %785 = vmatpush.msra.mxu0 0.0
  %786 = vmatpush.msra.mxu0 0.0
  %787 = vmatpush.msra.mxu0 0.0
  %788 = vmatpush.msra.mxu0 0.0
  %789 = vmatpush.msra.mxu0 0.0
  %790 = vmatpush.msra.mxu0 0.0
  %791 = vmatpush.msra.mxu0 0.0
  %792 = vmatpush.msra.mxu0 %v451
  %793 = vmatpush.msra.mxu0 %v443
  %794 = vmatpush.msra.mxu0 %v435
  %795 = vmatpush.msra.mxu0 %v427
  %796 = vmatmul.f32.gmra.mxu0 %v511
  %v797 = vpop.f32.mrf.mxu0
  %v798 = vadd.f32 %v472, %v797
  %799 = vmatmul.f32.gmra.mxu0 %v514
  %v800 = vpop.f32.mrf.mxu0
  %v801 = vadd.f32 %v477, %v800
  %802 = vmatmul.f32.gmra.mxu0 %v517
  %v803 = vpop.f32.mrf.mxu0
  %v804 = vadd.f32 %v482, %v803
  %805 = vmatmul.f32.gmra.mxu0 %v520
  %v806 = vpop.f32.mrf.mxu0
  %v807 = vadd.f32 %v487, %v806
  %808 = vmatmul.f32.gmra.mxu0 %v523
  %v809 = vpop.f32.mrf.mxu0
  %v810 = vadd.f32 %v492, %v809
  %811 = vmatmul.f32.gmra.mxu0 %v526
  %v812 = vpop.f32.mrf.mxu0
  %v813 = vadd.f32 %v497, %v812
  %814 = vmatmul.f32.gmra.mxu0 %v529
  %v815 = vpop.f32.mrf.mxu0
  %v816 = vadd.f32 %v502, %v815
  %817 = vmatmul.f32.gmra.mxu0 %v532
  %v818 = vpop.f32.mrf.mxu0
  %v819 = vadd.f32 %v507, %v818
  %820 = vdwg.mxu0
  %821 = vmatpush.msra.mxu0 0.0
  %822 = vmatpush.msra.mxu0 0.0
  %823 = vmatpush.msra.mxu0 0.0
  %824 = vmatpush.msra.mxu0 0.0
  %825 = vmatpush.msra.mxu0 0.0
  %826 = vmatpush.msra.mxu0 0.0
  %827 = vmatpush.msra.mxu0 0.0
  %828 = vmatpush.msra.mxu0 0.0
  %829 = vmatpush.msra.mxu0 0.0
  %830 = vmatpush.msra.mxu0 0.0
  %831 = vmatpush.msra.mxu0 0.0
  %832 = vmatpush.msra.mxu0 0.0
  %833 = vmatpush.msra.mxu0 %v452
  %834 = vmatpush.msra.mxu0 %v444
  %835 = vmatpush.msra.mxu0 %v436
  %836 = vmatpush.msra.mxu0 %v428
  %837 = vmatmul.f32.gmra.mxu0 %v511
  %v838 = vpop.f32.mrf.mxu0
  %v839 = vadd.f32 %v472, %v838
  %840 = vmatmul.f32.gmra.mxu0 %v514
  %v841 = vpop.f32.mrf.mxu0
  %v842 = vadd.f32 %v477, %v841
  %843 = vmatmul.f32.gmra.mxu0 %v517
  %v844 = vpop.f32.mrf.mxu0
  %v845 = vadd.f32 %v482, %v844
  %846 = vmatmul.f32.gmra.mxu0 %v520
  %v847 = vpop.f32.mrf.mxu0
  %v848 = vadd.f32 %v487, %v847
  %849 = vmatmul.f32.gmra.mxu0 %v523
  %v850 = vpop.f32.mrf.mxu0
  %v851 = vadd.f32 %v492, %v850
  %852 = vmatmul.f32.gmra.mxu0 %v526
  %v853 = vpop.f32.mrf.mxu0
  %v854 = vadd.f32 %v497, %v853
  %855 = vmatmul.f32.gmra.mxu0 %v529
  %v856 = vpop.f32.mrf.mxu0
  %v857 = vadd.f32 %v502, %v856
  %858 = vmatmul.f32.gmra.mxu0 %v532
  %v859 = vpop.f32.mrf.mxu0
  %v860 = vadd.f32 %v507, %v859
  %861 = vdwg.mxu0
  %v862 = vtanh.pop %v552
  %v863 = vtanh.pop %v593
  %v864 = vtanh.pop %v634
  %v865 = vtanh.pop %v675
  %v866 = vtanh.pop %v716
  %v867 = vtanh.pop %v757
  %v868 = vtanh.pop %v798
  %v869 = vtanh.pop %v839
  %v870 = vtanh.pop %v555
  %v871 = vtanh.pop %v596
  %v872 = vtanh.pop %v637
  %v873 = vtanh.pop %v678
  %v874 = vtanh.pop %v719
  %v875 = vtanh.pop %v760
  %v876 = vtanh.pop %v801
  %v877 = vtanh.pop %v842
  %v878 = vtanh.pop %v558
  %v879 = vtanh.pop %v599
  %v880 = vtanh.pop %v640
  %v881 = vtanh.pop %v681
  %v882 = vtanh.pop %v722
  %v883 = vtanh.pop %v763
  %v884 = vtanh.pop %v804
  %v885 = vtanh.pop %v845
  %v886 = vtanh.pop %v561
  %v887 = vtanh.pop %v602
  %v888 = vtanh.pop %v643
  %v889 = vtanh.pop %v684
  %v890 = vtanh.pop %v725
  %v891 = vtanh.pop %v766
  %v892 = vtanh.pop %v807
  %v893 = vtanh.pop %v848
  %v894 = vtanh.pop %v564
  %v895 = vtanh.pop %v605
  %v896 = vtanh.pop %v646
  %v897 = vtanh.pop %v687
  %v898 = vtanh.pop %v728
  %v899 = vtanh.pop %v769
  %v900 = vtanh.pop %v810
  %v901 = vtanh.pop %v851
  %v902 = vtanh.pop %v567
  %v903 = vtanh.pop %v608
  %v904 = vtanh.pop %v649
  %v905 = vtanh.pop %v690
  %v906 = vtanh.pop %v731
  %v907 = vtanh.pop %v772
  %v908 = vtanh.pop %v813
  %v909 = vtanh.pop %v854
  %v910 = vtanh.pop %v570
  %v911 = vtanh.pop %v611
  %v912 = vtanh.pop %v652
  %v913 = vtanh.pop %v693
  %v914 = vtanh.pop %v734
  %v915 = vtanh.pop %v775
  %v916 = vtanh.pop %v816
  %v917 = vtanh.pop %v857
  %v918 = vtanh.pop %v573
  %v919 = vtanh.pop %v614
  %v920 = vtanh.pop %v655
  %v921 = vtanh.pop %v696
  %v922 = vtanh.pop %v737
  %v923 = vtanh.pop %v778
  %v924 = vtanh.pop %v819
  %v925 = vtanh.pop %v860
  %v926 = vadd.f32 %v862, %v421
  %v927 = vadd.f32 %v863, %v422
  %v928 = vadd.f32 %v864, %v423
  %v929 = vadd.f32 %v865, %v424
  %v930 = vadd.f32 %v866, %v425
  %v931 = vadd.f32 %v867, %v426
  %v932 = vadd.f32 %v868, %v427
  %v933 = vadd.f32 %v869, %v428
  %v934 = vadd.f32 %v870, %v429
  %v935 = vadd.f32 %v871, %v430
  %v936 = vadd.f32 %v872, %v431
  %v937 = vadd.f32 %v873, %v432
  %v938 = vadd.f32 %v874, %v433
  %v939 = vadd.f32 %v875, %v434
  %v940 = vadd.f32 %v876, %v435
  %v941 = vadd.f32 %v877, %v436
  %v942 = vadd.f32 %v878, %v437
  %v943 = vadd.f32 %v879, %v438
  %v944 = vadd.f32 %v880, %v439
  %v945 = vadd.f32 %v881, %v440
  %v946 = vadd.f32 %v882, %v441
  %v947 = vadd.f32 %v883, %v442
  %v948 = vadd.f32 %v884, %v443
  %v949 = vadd.f32 %v885, %v444
  %v950 = vadd.f32 %v886, %v445
  %v951 = vadd.f32 %v887, %v446
  %v952 = vadd.f32 %v888, %v447
  %v953 = vadd.f32 %v889, %v448
  %v954 = vadd.f32 %v890, %v449
  %v955 = vadd.f32 %v891, %v450
  %v956 = vadd.f32 %v892, %v451
  %v957 = vadd.f32 %v893, %v452
  %v958 = vadd.f32 %v894, %v421
  %v959 = vadd.f32 %v895, %v422
  %v960 = vadd.f32 %v896, %v423
  %v961 = vadd.f32 %v897, %v424
  %v962 = vadd.f32 %v898, %v425
  %v963 = vadd.f32 %v899, %v426
  %v964 = vadd.f32 %v900, %v427
  %v965 = vadd.f32 %v901, %v428
  %v966 = vadd.f32 %v902, %v429
  %v967 = vadd.f32 %v903, %v430
  %v968 = vadd.f32 %v904, %v431
  %v969 = vadd.f32 %v905, %v432
  %v970 = vadd.f32 %v906, %v433
  %v971 = vadd.f32 %v907, %v434
  %v972 = vadd.f32 %v908, %v435
  %v973 = vadd.f32 %v909, %v436
  %v974 = vadd.f32 %v910, %v437
  %v975 = vadd.f32 %v911, %v438
  %v976 = vadd.f32 %v912, %v439
  %v977 = vadd.f32 %v913, %v440
  %v978 = vadd.f32 %v914, %v441
  %v979 = vadd.f32 %v915, %v442
  %v980 = vadd.f32 %v916, %v443
  %v981 = vadd.f32 %v917, %v444
  %v982 = vadd.f32 %v918, %v445
  %v983 = vadd.f32 %v919, %v446
  %v984 = vadd.f32 %v920, %v447
  %v985 = vadd.f32 %v921, %v448
  %v986 = vadd.f32 %v922, %v449
  %v987 = vadd.f32 %v923, %v450
  %v988 = vadd.f32 %v924, %v451
  %v989 = vadd.f32 %v925, %v452
  %990 = vxpose.xlu0.b32.start [1/16] %v926, 128
  %991 = vxpose.xlu0.b32.cont [2/16] %v934, 128
  %992 = vxpose.xlu0.b32.cont [3/16] %v942, 128
  %993 = vxpose.xlu0.b32.cont [4/16] %v950, 128
  %994 = vxpose.xlu0.b32.cont [5/16] %v958, 128
  %995 = vxpose.xlu0.b32.cont [6/16] %v966, 128
  %996 = vxpose.xlu0.b32.cont [7/16] %v974, 128
  %997 = vxpose.xlu0.b32.cont [8/16] %v982, 128
  %998 = vxpose.xlu0.b32.cont [9/16] 0.0, 128
  %999 = vxpose.xlu0.b32.cont [10/16] 0.0, 128
  %1000 = vxpose.xlu0.b32.cont [11/16] 0.0, 128
  %1001 = vxpose.xlu0.b32.cont [12/16] 0.0, 128
  %1002 = vxpose.xlu0.b32.cont [13/16] 0.0, 128
  %1003 = vxpose.xlu0.b32.cont [14/16] 0.0, 128
  %1004 = vxpose.xlu0.b32.cont [15/16] 0.0, 128
  %1005 = vxpose.xlu0.b32.end [16/16] 0.0, 128
  %v1006 = vpop.trf.xlu0
  %v1007 = vpop.trf.xlu0
  %v1008 = vpop.trf.xlu0
  %v1009 = vpop.trf.xlu0
  %v1010 = vpop.trf.xlu0
  %v1011 = vpop.trf.xlu0
  %v1012 = vpop.trf.xlu0
  %v1013 = vpop.trf.xlu0
  %v1014 = vpop.trf.xlu0
  %v1015 = vpop.trf.xlu0
  %v1016 = vpop.trf.xlu0
  %v1017 = vpop.trf.xlu0
  %v1018 = vpop.trf.xlu0
  %v1019 = vpop.trf.xlu0
  %v1020 = vpop.trf.xlu0
  %v1021 = vpop.trf.xlu0
  %1022 = vxpose.xlu0.b32.start [1/16] %v927, 128
  %1023 = vxpose.xlu0.b32.cont [2/16] %v935, 128
  %1024 = vxpose.xlu0.b32.cont [3/16] %v943, 128
  %1025 = vxpose.xlu0.b32.cont [4/16] %v951, 128
  %1026 = vxpose.xlu0.b32.cont [5/16] %v959, 128
  %1027 = vxpose.xlu0.b32.cont [6/16] %v967, 128
  %1028 = vxpose.xlu0.b32.cont [7/16] %v975, 128
  %1029 = vxpose.xlu0.b32.cont [8/16] %v983, 128
  %1030 = vxpose.xlu0.b32.cont [9/16] 0.0, 128
  %1031 = vxpose.xlu0.b32.cont [10/16] 0.0, 128
  %1032 = vxpose.xlu0.b32.cont [11/16] 0.0, 128
  %1033 = vxpose.xlu0.b32.cont [12/16] 0.0, 128
  %1034 = vxpose.xlu0.b32.cont [13/16] 0.0, 128
  %1035 = vxpose.xlu0.b32.cont [14/16] 0.0, 128
  %1036 = vxpose.xlu0.b32.cont [15/16] 0.0, 128
  %1037 = vxpose.xlu0.b32.end [16/16] 0.0, 128
  %v1038 = vpop.trf.xlu0
  %v1039 = vpop.trf.xlu0
  %v1040 = vpop.trf.xlu0
  %v1041 = vpop.trf.xlu0
  %v1042 = vpop.trf.xlu0
  %v1043 = vpop.trf.xlu0
  %v1044 = vpop.trf.xlu0
  %v1045 = vpop.trf.xlu0
  %v1046 = vpop.trf.xlu0
  %v1047 = vpop.trf.xlu0
  %v1048 = vpop.trf.xlu0
  %v1049 = vpop.trf.xlu0
  %v1050 = vpop.trf.xlu0
  %v1051 = vpop.trf.xlu0
  %v1052 = vpop.trf.xlu0
  %v1053 = vpop.trf.xlu0
  %1054 = vxpose.xlu0.b32.start [1/16] %v928, 128
  %1055 = vxpose.xlu0.b32.cont [2/16] %v936, 128
  %1056 = vxpose.xlu0.b32.cont [3/16] %v944, 128
  %1057 = vxpose.xlu0.b32.cont [4/16] %v952, 128
  %1058 = vxpose.xlu0.b32.cont [5/16] %v960, 128
  %1059 = vxpose.xlu0.b32.cont [6/16] %v968, 128
  %1060 = vxpose.xlu0.b32.cont [7/16] %v976, 128
  %1061 = vxpose.xlu0.b32.cont [8/16] %v984, 128
  %1062 = vxpose.xlu0.b32.cont [9/16] 0.0, 128
  %1063 = vxpose.xlu0.b32.cont [10/16] 0.0, 128
  %1064 = vxpose.xlu0.b32.cont [11/16] 0.0, 128
  %1065 = vxpose.xlu0.b32.cont [12/16] 0.0, 128
  %1066 = vxpose.xlu0.b32.cont [13/16] 0.0, 128
  %1067 = vxpose.xlu0.b32.cont [14/16] 0.0, 128
  %1068 = vxpose.xlu0.b32.cont [15/16] 0.0, 128
  %1069 = vxpose.xlu0.b32.end [16/16] 0.0, 128
  %v1070 = vpop.trf.xlu0
  %v1071 = vpop.trf.xlu0
  %v1072 = vpop.trf.xlu0
  %v1073 = vpop.trf.xlu0
  %v1074 = vpop.trf.xlu0
  %v1075 = vpop.trf.xlu0
  %v1076 = vpop.trf.xlu0
  %v1077 = vpop.trf.xlu0
  %v1078 = vpop.trf.xlu0
  %v1079 = vpop.trf.xlu0
  %v1080 = vpop.trf.xlu0
  %v1081 = vpop.trf.xlu0
  %v1082 = vpop.trf.xlu0
  %v1083 = vpop.trf.xlu0
  %v1084 = vpop.trf.xlu0
  %v1085 = vpop.trf.xlu0
  %1086 = vxpose.xlu0.b32.start [1/16] %v929, 128
  %1087 = vxpose.xlu0.b32.cont [2/16] %v937, 128
  %1088 = vxpose.xlu0.b32.cont [3/16] %v945, 128
  %1089 = vxpose.xlu0.b32.cont [4/16] %v953, 128
  %1090 = vxpose.xlu0.b32.cont [5/16] %v961, 128
  %1091 = vxpose.xlu0.b32.cont [6/16] %v969, 128
  %1092 = vxpose.xlu0.b32.cont [7/16] %v977, 128
  %1093 = vxpose.xlu0.b32.cont [8/16] %v985, 128
  %1094 = vxpose.xlu0.b32.cont [9/16] 0.0, 128
  %1095 = vxpose.xlu0.b32.cont [10/16] 0.0, 128
  %1096 = vxpose.xlu0.b32.cont [11/16] 0.0, 128
  %1097 = vxpose.xlu0.b32.cont [12/16] 0.0, 128
  %1098 = vxpose.xlu0.b32.cont [13/16] 0.0, 128
  %1099 = vxpose.xlu0.b32.cont [14/16] 0.0, 128
  %1100 = vxpose.xlu0.b32.cont [15/16] 0.0, 128
  %1101 = vxpose.xlu0.b32.end [16/16] 0.0, 128
  %v1102 = vpop.trf.xlu0
  %v1103 = vpop.trf.xlu0
  %v1104 = vpop.trf.xlu0
  %v1105 = vpop.trf.xlu0
  %v1106 = vpop.trf.xlu0
  %v1107 = vpop.trf.xlu0
  %v1108 = vpop.trf.xlu0
  %v1109 = vpop.trf.xlu0
  %v1110 = vpop.trf.xlu0
  %v1111 = vpop.trf.xlu0
  %v1112 = vpop.trf.xlu0
  %v1113 = vpop.trf.xlu0
  %v1114 = vpop.trf.xlu0
  %v1115 = vpop.trf.xlu0
  %v1116 = vpop.trf.xlu0
  %v1117 = vpop.trf.xlu0
  %1118 = vxpose.xlu0.b32.start [1/16] %v930, 128
  %1119 = vxpose.xlu0.b32.cont [2/16] %v938, 128
  %1120 = vxpose.xlu0.b32.cont [3/16] %v946, 128
  %1121 = vxpose.xlu0.b32.cont [4/16] %v954, 128
  %1122 = vxpose.xlu0.b32.cont [5/16] %v962, 128
  %1123 = vxpose.xlu0.b32.cont [6/16] %v970, 128
  %1124 = vxpose.xlu0.b32.cont [7/16] %v978, 128
  %1125 = vxpose.xlu0.b32.cont [8/16] %v986, 128
  %1126 = vxpose.xlu0.b32.cont [9/16] 0.0, 128
  %1127 = vxpose.xlu0.b32.cont [10/16] 0.0, 128
  %1128 = vxpose.xlu0.b32.cont [11/16] 0.0, 128
  %1129 = vxpose.xlu0.b32.cont [12/16] 0.0, 128
  %1130 = vxpose.xlu0.b32.cont [13/16] 0.0, 128
  %1131 = vxpose.xlu0.b32.cont [14/16] 0.0, 128
  %1132 = vxpose.xlu0.b32.cont [15/16] 0.0, 128
  %1133 = vxpose.xlu0.b32.end [16/16] 0.0, 128
  %v1134 = vpop.trf.xlu0
  %v1135 = vpop.trf.xlu0
  %v1136 = vpop.trf.xlu0
  %v1137 = vpop.trf.xlu0
  %v1138 = vpop.trf.xlu0
  %v1139 = vpop.trf.xlu0
  %v1140 = vpop.trf.xlu0
  %v1141 = vpop.trf.xlu0
  %v1142 = vpop.trf.xlu0
  %v1143 = vpop.trf.xlu0
  %v1144 = vpop.trf.xlu0
  %v1145 = vpop.trf.xlu0
  %v1146 = vpop.trf.xlu0
  %v1147 = vpop.trf.xlu0
  %v1148 = vpop.trf.xlu0
  %v1149 = vpop.trf.xlu0
  %1150 = vxpose.xlu0.b32.start [1/16] %v931, 128
  %1151 = vxpose.xlu0.b32.cont [2/16] %v939, 128
  %1152 = vxpose.xlu0.b32.cont [3/16] %v947, 128
  %1153 = vxpose.xlu0.b32.cont [4/16] %v955, 128
  %1154 = vxpose.xlu0.b32.cont [5/16] %v963, 128
  %1155 = vxpose.xlu0.b32.cont [6/16] %v971, 128
  %1156 = vxpose.xlu0.b32.cont [7/16] %v979, 128
  %1157 = vxpose.xlu0.b32.cont [8/16] %v987, 128
  %1158 = vxpose.xlu0.b32.cont [9/16] 0.0, 128
  %1159 = vxpose.xlu0.b32.cont [10/16] 0.0, 128
  %1160 = vxpose.xlu0.b32.cont [11/16] 0.0, 128
  %1161 = vxpose.xlu0.b32.cont [12/16] 0.0, 128
  %1162 = vxpose.xlu0.b32.cont [13/16] 0.0, 128
  %1163 = vxpose.xlu0.b32.cont [14/16] 0.0, 128
  %1164 = vxpose.xlu0.b32.cont [15/16] 0.0, 128
  %1165 = vxpose.xlu0.b32.end [16/16] 0.0, 128
  %v1166 = vpop.trf.xlu0
  %v1167 = vpop.trf.xlu0
  %v1168 = vpop.trf.xlu0
  %v1169 = vpop.trf.xlu0
  %v1170 = vpop.trf.xlu0
  %v1171 = vpop.trf.xlu0
  %v1172 = vpop.trf.xlu0
  %v1173 = vpop.trf.xlu0
  %v1174 = vpop.trf.xlu0
  %v1175 = vpop.trf.xlu0
  %v1176 = vpop.trf.xlu0
  %v1177 = vpop.trf.xlu0
  %v1178 = vpop.trf.xlu0
  %v1179 = vpop.trf.xlu0
  %v1180 = vpop.trf.xlu0
  %v1181 = vpop.trf.xlu0
  %1182 = vxpose.xlu0.b32.start [1/16] %v932, 128
  %1183 = vxpose.xlu0.b32.cont [2/16] %v940, 128
  %1184 = vxpose.xlu0.b32.cont [3/16] %v948, 128
  %1185 = vxpose.xlu0.b32.cont [4/16] %v956, 128
  %1186 = vxpose.xlu0.b32.cont [5/16] %v964, 128
  %1187 = vxpose.xlu0.b32.cont [6/16] %v972, 128
  %1188 = vxpose.xlu0.b32.cont [7/16] %v980, 128
  %1189 = vxpose.xlu0.b32.cont [8/16] %v988, 128
  %1190 = vxpose.xlu0.b32.cont [9/16] 0.0, 128
  %1191 = vxpose.xlu0.b32.cont [10/16] 0.0, 128
  %1192 = vxpose.xlu0.b32.cont [11/16] 0.0, 128
  %1193 = vxpose.xlu0.b32.cont [12/16] 0.0, 128
  %1194 = vxpose.xlu0.b32.cont [13/16] 0.0, 128
  %1195 = vxpose.xlu0.b32.cont [14/16] 0.0, 128
  %1196 = vxpose.xlu0.b32.cont [15/16] 0.0, 128
  %1197 = vxpose.xlu0.b32.end [16/16] 0.0, 128
  %v1198 = vpop.trf.xlu0
  %v1199 = vpop.trf.xlu0
  %v1200 = vpop.trf.xlu0
  %v1201 = vpop.trf.xlu0
  %v1202 = vpop.trf.xlu0
  %v1203 = vpop.trf.xlu0
  %v1204 = vpop.trf.xlu0
  %v1205 = vpop.trf.xlu0
  %v1206 = vpop.trf.xlu0
  %v1207 = vpop.trf.xlu0
  %v1208 = vpop.trf.xlu0
  %v1209 = vpop.trf.xlu0
  %v1210 = vpop.trf.xlu0
  %v1211 = vpop.trf.xlu0
  %v1212 = vpop.trf.xlu0
  %v1213 = vpop.trf.xlu0
  %1214 = vxpose.xlu0.b32.start [1/16] %v933, 128
  %1215 = vxpose.xlu0.b32.cont [2/16] %v941, 128
  %1216 = vxpose.xlu0.b32.cont [3/16] %v949, 128
  %1217 = vxpose.xlu0.b32.cont [4/16] %v957, 128
  %1218 = vxpose.xlu0.b32.cont [5/16] %v965, 128
  %1219 = vxpose.xlu0.b32.cont [6/16] %v973, 128
  %1220 = vxpose.xlu0.b32.cont [7/16] %v981, 128
  %1221 = vxpose.xlu0.b32.cont [8/16] %v989, 128
  %1222 = vxpose.xlu0.b32.cont [9/16] 0.0, 128
  %1223 = vxpose.xlu0.b32.cont [10/16] 0.0, 128
  %1224 = vxpose.xlu0.b32.cont [11/16] 0.0, 128
  %1225 = vxpose.xlu0.b32.cont [12/16] 0.0, 128
  %1226 = vxpose.xlu0.b32.cont [13/16] 0.0, 128
  %1227 = vxpose.xlu0.b32.cont [14/16] 0.0, 128
  %1228 = vxpose.xlu0.b32.cont [15/16] 0.0, 128
  %1229 = vxpose.xlu0.b32.end [16/16] 0.0, 128
  %v1230 = vpop.trf.xlu0
  %v1231 = vpop.trf.xlu0
  %v1232 = vpop.trf.xlu0
  %v1233 = vpop.trf.xlu0
  %v1234 = vpop.trf.xlu0
  %v1235 = vpop.trf.xlu0
  %v1236 = vpop.trf.xlu0
  %v1237 = vpop.trf.xlu0
  %v1238 = vpop.trf.xlu0
  %v1239 = vpop.trf.xlu0
  %v1240 = vpop.trf.xlu0
  %v1241 = vpop.trf.xlu0
  %v1242 = vpop.trf.xlu0
  %v1243 = vpop.trf.xlu0
  %v1244 = vpop.trf.xlu0
  %v1245 = vpop.trf.xlu0
  %vm1246 = vcmask 523264
  %1247 = vst.msk [vmem:[%s7] sm:$0xff] %vm1246, %v1006
  %1248 = vst.msk [vmem:[%s7 + $0x8] sm:$0xff] %vm1246, %v1007
  %1249 = vst.msk [vmem:[%s7 + $0x10] sm:$0xff] %vm1246, %v1008
  %1250 = vst.msk [vmem:[%s7 + $0x18] sm:$0xff] %vm1246, %v1009
  %1251 = vst.msk [vmem:[%s7 + $0x20] sm:$0xff] %vm1246, %v1010
  %1252 = vst.msk [vmem:[%s7 + $0x28] sm:$0xff] %vm1246, %v1011
  %1253 = vst.msk [vmem:[%s7 + $0x30] sm:$0xff] %vm1246, %v1012
  %1254 = vst.msk [vmem:[%s7 + $0x38] sm:$0xff] %vm1246, %v1013
  %1255 = vst.msk [vmem:[%s7 + $0x40] sm:$0xff] %vm1246, %v1014
  %1256 = vst.msk [vmem:[%s7 + $0x48] sm:$0xff] %vm1246, %v1015
  %1257 = vst.msk [vmem:[%s7 + $0x50] sm:$0xff] %vm1246, %v1016
  %1258 = vst.msk [vmem:[%s7 + $0x58] sm:$0xff] %vm1246, %v1017
  %1259 = vst.msk [vmem:[%s7 + $0x60] sm:$0xff] %vm1246, %v1018
  %1260 = vst.msk [vmem:[%s7 + $0x68] sm:$0xff] %vm1246, %v1019
  %1261 = vst.msk [vmem:[%s7 + $0x70] sm:$0xff] %vm1246, %v1020
  %1262 = vst.msk [vmem:[%s7 + $0x78] sm:$0xff] %vm1246, %v1021
  %1263 = vst.msk [vmem:[%s7 + $0x80] sm:$0xff] %vm1246, %v1038
  %1264 = vst.msk [vmem:[%s7 + $0x88] sm:$0xff] %vm1246, %v1039
  %1265 = vst.msk [vmem:[%s7 + $0x90] sm:$0xff] %vm1246, %v1040
  %1266 = vst.msk [vmem:[%s7 + $0x98] sm:$0xff] %vm1246, %v1041
  %1267 = vst.msk [vmem:[%s7 + $0xa0] sm:$0xff] %vm1246, %v1042
  %1268 = vst.msk [vmem:[%s7 + $0xa8] sm:$0xff] %vm1246, %v1043
  %1269 = vst.msk [vmem:[%s7 + $0xb0] sm:$0xff] %vm1246, %v1044
  %1270 = vst.msk [vmem:[%s7 + $0xb8] sm:$0xff] %vm1246, %v1045
  %1271 = vst.msk [vmem:[%s7 + $0xc0] sm:$0xff] %vm1246, %v1046
  %1272 = vst.msk [vmem:[%s7 + $0xc8] sm:$0xff] %vm1246, %v1047
  %1273 = vst.msk [vmem:[%s7 + $0xd0] sm:$0xff] %vm1246, %v1048
  %1274 = vst.msk [vmem:[%s7 + $0xd8] sm:$0xff] %vm1246, %v1049
  %1275 = vst.msk [vmem:[%s7 + $0xe0] sm:$0xff] %vm1246, %v1050
  %1276 = vst.msk [vmem:[%s7 + $0xe8] sm:$0xff] %vm1246, %v1051
  %1277 = vst.msk [vmem:[%s7 + $0xf0] sm:$0xff] %vm1246, %v1052
  %1278 = vst.msk [vmem:[%s7 + $0xf8] sm:$0xff] %vm1246, %v1053
  %1279 = vst.msk [vmem:[%s7 + $0x100] sm:$0xff] %vm1246, %v1070
  %1280 = vst.msk [vmem:[%s7 + $0x108] sm:$0xff] %vm1246, %v1071
  %1281 = vst.msk [vmem:[%s7 + $0x110] sm:$0xff] %vm1246, %v1072
  %1282 = vst.msk [vmem:[%s7 + $0x118] sm:$0xff] %vm1246, %v1073
  %1283 = vst.msk [vmem:[%s7 + $0x120] sm:$0xff] %vm1246, %v1074
  %1284 = vst.msk [vmem:[%s7 + $0x128] sm:$0xff] %vm1246, %v1075
  %1285 = vst.msk [vmem:[%s7 + $0x130] sm:$0xff] %vm1246, %v1076
  %1286 = vst.msk [vmem:[%s7 + $0x138] sm:$0xff] %vm1246, %v1077
  %1287 = vst.msk [vmem:[%s7 + $0x140] sm:$0xff] %vm1246, %v1078
  %1288 = vst.msk [vmem:[%s7 + $0x148] sm:$0xff] %vm1246, %v1079
  %1289 = vst.msk [vmem:[%s7 + $0x150] sm:$0xff] %vm1246, %v1080
  %1290 = vst.msk [vmem:[%s7 + $0x158] sm:$0xff] %vm1246, %v1081
  %1291 = vst.msk [vmem:[%s7 + $0x160] sm:$0xff] %vm1246, %v1082
  %1292 = vst.msk [vmem:[%s7 + $0x168] sm:$0xff] %vm1246, %v1083
  %1293 = vst.msk [vmem:[%s7 + $0x170] sm:$0xff] %vm1246, %v1084
  %1294 = vst.msk [vmem:[%s7 + $0x178] sm:$0xff] %vm1246, %v1085
  %1295 = vst.msk [vmem:[%s7 + $0x180] sm:$0xff] %vm1246, %v1102
  %1296 = vst.msk [vmem:[%s7 + $0x188] sm:$0xff] %vm1246, %v1103
  %1297 = vst.msk [vmem:[%s7 + $0x190] sm:$0xff] %vm1246, %v1104
  %1298 = vst.msk [vmem:[%s7 + $0x198] sm:$0xff] %vm1246, %v1105
  %1299 = vst.msk [vmem:[%s7 + $0x1a0] sm:$0xff] %vm1246, %v1106
  %1300 = vst.msk [vmem:[%s7 + $0x1a8] sm:$0xff] %vm1246, %v1107
  %1301 = vst.msk [vmem:[%s7 + $0x1b0] sm:$0xff] %vm1246, %v1108
  %1302 = vst.msk [vmem:[%s7 + $0x1b8] sm:$0xff] %vm1246, %v1109
  %1303 = vst.msk [vmem:[%s7 + $0x1c0] sm:$0xff] %vm1246, %v1110
  %1304 = vst.msk [vmem:[%s7 + $0x1c8] sm:$0xff] %vm1246, %v1111
  %1305 = vst.msk [vmem:[%s7 + $0x1d0] sm:$0xff] %vm1246, %v1112
  %1306 = vst.msk [vmem:[%s7 + $0x1d8] sm:$0xff] %vm1246, %v1113
  %1307 = vst.msk [vmem:[%s7 + $0x1e0] sm:$0xff] %vm1246, %v1114
  %1308 = vst.msk [vmem:[%s7 + $0x1e8] sm:$0xff] %vm1246, %v1115
  %1309 = vst.msk [vmem:[%s7 + $0x1f0] sm:$0xff] %vm1246, %v1116
  %1310 = vst.msk [vmem:[%s7 + $0x1f8] sm:$0xff] %vm1246, %v1117
  %1311 = vst.msk [vmem:[%s7 + $0x200] sm:$0xff] %vm1246, %v1134
  %1312 = vst.msk [vmem:[%s7 + $0x208] sm:$0xff] %vm1246, %v1135
  %1313 = vst.msk [vmem:[%s7 + $0x210] sm:$0xff] %vm1246, %v1136
  %1314 = vst.msk [vmem:[%s7 + $0x218] sm:$0xff] %vm1246, %v1137
  %1315 = vst.msk [vmem:[%s7 + $0x220] sm:$0xff] %vm1246, %v1138
  %1316 = vst.msk [vmem:[%s7 + $0x228] sm:$0xff] %vm1246, %v1139
  %1317 = vst.msk [vmem:[%s7 + $0x230] sm:$0xff] %vm1246, %v1140
  %1318 = vst.msk [vmem:[%s7 + $0x238] sm:$0xff] %vm1246, %v1141
  %1319 = vst.msk [vmem:[%s7 + $0x240] sm:$0xff] %vm1246, %v1142
  %1320 = vst.msk [vmem:[%s7 + $0x248] sm:$0xff] %vm1246, %v1143
  %1321 = vst.msk [vmem:[%s7 + $0x250] sm:$0xff] %vm1246, %v1144
  %1322 = vst.msk [vmem:[%s7 + $0x258] sm:$0xff] %vm1246, %v1145
  %1323 = vst.msk [vmem:[%s7 + $0x260] sm:$0xff] %vm1246, %v1146
  %1324 = vst.msk [vmem:[%s7 + $0x268] sm:$0xff] %vm1246, %v1147
  %1325 = vst.msk [vmem:[%s7 + $0x270] sm:$0xff] %vm1246, %v1148
  %1326 = vst.msk [vmem:[%s7 + $0x278] sm:$0xff] %vm1246, %v1149
  %1327 = vst.msk [vmem:[%s7 + $0x280] sm:$0xff] %vm1246, %v1166
  %1328 = vst.msk [vmem:[%s7 + $0x288] sm:$0xff] %vm1246, %v1167
  %1329 = vst.msk [vmem:[%s7 + $0x290] sm:$0xff] %vm1246, %v1168
  %1330 = vst.msk [vmem:[%s7 + $0x298] sm:$0xff] %vm1246, %v1169
  %1331 = vst.msk [vmem:[%s7 + $0x2a0] sm:$0xff] %vm1246, %v1170
  %1332 = vst.msk [vmem:[%s7 + $0x2a8] sm:$0xff] %vm1246, %v1171
  %1333 = vst.msk [vmem:[%s7 + $0x2b0] sm:$0xff] %vm1246, %v1172
  %1334 = vst.msk [vmem:[%s7 + $0x2b8] sm:$0xff] %vm1246, %v1173
  %1335 = vst.msk [vmem:[%s7 + $0x2c0] sm:$0xff] %vm1246, %v1174
  %1336 = vst.msk [vmem:[%s7 + $0x2c8] sm:$0xff] %vm1246, %v1175
  %1337 = vst.msk [vmem:[%s7 + $0x2d0] sm:$0xff] %vm1246, %v1176
  %1338 = vst.msk [vmem:[%s7 + $0x2d8] sm:$0xff] %vm1246, %v1177
  %1339 = vst.msk [vmem:[%s7 + $0x2e0] sm:$0xff] %vm1246, %v1178
  %1340 = vst.msk [vmem:[%s7 + $0x2e8] sm:$0xff] %vm1246, %v1179
  %1341 = vst.msk [vmem:[%s7 + $0x2f0] sm:$0xff] %vm1246, %v1180
  %1342 = vst.msk [vmem:[%s7 + $0x2f8] sm:$0xff] %vm1246, %v1181
  %1343 = vst.msk [vmem:[%s7 + $0x300] sm:$0xff] %vm1246, %v1198
  %1344 = vst.msk [vmem:[%s7 + $0x308] sm:$0xff] %vm1246, %v1199
  %1345 = vst.msk [vmem:[%s7 + $0x310] sm:$0xff] %vm1246, %v1200
  %1346 = vst.msk [vmem:[%s7 + $0x318] sm:$0xff] %vm1246, %v1201
  %1347 = vst.msk [vmem:[%s7 + $0x320] sm:$0xff] %vm1246, %v1202
  %1348 = vst.msk [vmem:[%s7 + $0x328] sm:$0xff] %vm1246, %v1203
  %1349 = vst.msk [vmem:[%s7 + $0x330] sm:$0xff] %vm1246, %v1204
  %1350 = vst.msk [vmem:[%s7 + $0x338] sm:$0xff] %vm1246, %v1205
  %1351 = vst.msk [vmem:[%s7 + $0x340] sm:$0xff] %vm1246, %v1206
  %1352 = vst.msk [vmem:[%s7 + $0x348] sm:$0xff] %vm1246, %v1207
  %1353 = vst.msk [vmem:[%s7 + $0x350] sm:$0xff] %vm1246, %v1208
  %1354 = vst.msk [vmem:[%s7 + $0x358] sm:$0xff] %vm1246, %v1209
  %1355 = vst.msk [vmem:[%s7 + $0x360] sm:$0xff] %vm1246, %v1210
  %1356 = vst.msk [vmem:[%s7 + $0x368] sm:$0xff] %vm1246, %v1211
  %1357 = vst.msk [vmem:[%s7 + $0x370] sm:$0xff] %vm1246, %v1212
  %1358 = vst.msk [vmem:[%s7 + $0x378] sm:$0xff] %vm1246, %v1213
  %1359 = vst.msk [vmem:[%s7 + $0x380] sm:$0xff] %vm1246, %v1230
  %1360 = vst.msk [vmem:[%s7 + $0x388] sm:$0xff] %vm1246, %v1231
  %1361 = vst.msk [vmem:[%s7 + $0x390] sm:$0xff] %vm1246, %v1232
  %1362 = vst.msk [vmem:[%s7 + $0x398] sm:$0xff] %vm1246, %v1233
  %1363 = vst.msk [vmem:[%s7 + $0x3a0] sm:$0xff] %vm1246, %v1234
  %1364 = vst.msk [vmem:[%s7 + $0x3a8] sm:$0xff] %vm1246, %v1235
  %1365 = vst.msk [vmem:[%s7 + $0x3b0] sm:$0xff] %vm1246, %v1236
  %1366 = vst.msk [vmem:[%s7 + $0x3b8] sm:$0xff] %vm1246, %v1237
  %1367 = vst.msk [vmem:[%s7 + $0x3c0] sm:$0xff] %vm1246, %v1238
  %1368 = vst.msk [vmem:[%s7 + $0x3c8] sm:$0xff] %vm1246, %v1239
  %1369 = vst.msk [vmem:[%s7 + $0x3d0] sm:$0xff] %vm1246, %v1240
  %1370 = vst.msk [vmem:[%s7 + $0x3d8] sm:$0xff] %vm1246, %v1241
  %1371 = vst.msk [vmem:[%s7 + $0x3e0] sm:$0xff] %vm1246, %v1242
  %1372 = vst.msk [vmem:[%s7 + $0x3e8] sm:$0xff] %vm1246, %v1243
  %1373 = vst.msk [vmem:[%s7 + $0x3f0] sm:$0xff] %vm1246, %v1244
  %1374 = vst.msk [vmem:[%s7 + $0x3f8] sm:$0xff] %vm1246, %v1245
  // Predicated region
  $region30: #{tpu_custom_call.1} parent=0 // pred_check
    _
  $region31: #{tpu_custom_call.1} parent=0 // pred_check_branch
    %1376 = sbr.rel (0) target = $region33
  $region32: #{tpu_custom_call.1} parent=0 // pred_region
    _
  $region33: #{tpu_custom_call.1} parent=0 // pred_fallthru
    _
  // Predicated region
  $region34: #{tpu_custom_call.1} parent=0 // pred_check
    _
  $region35: #{tpu_custom_call.1} parent=0 // pred_check_branch
    %1378 = sbr.rel (0) target = $region37
  $region36: #{tpu_custom_call.1} parent=0 // pred_region
    _
  $region37: #{tpu_custom_call.1} parent=0 // pred_fallthru
    _

</llo_original>
